<compile_context>
chip_gen: v7x
topology: tpu7x:2x2x1
jax: 0.10.0
libtpu: 0.0.40
codegen_flags: <defaults>
</compile_context>

<pallas_src>
import math

import jax
import jax.numpy as jnp
from jax.experimental import pallas as pl
from jax.experimental.pallas import tpu as pltpu


def make_positional_encoding(d_model: int, max_len: int, dtype=jnp.float32):
    """Deterministic construction of the `pe` buffer, identical to __init__."""
    position = jnp.arange(max_len, dtype=jnp.float32)[:, None]            # (max_len, 1)
    div_term = jnp.exp(
        jnp.arange(0, d_model, 2, dtype=jnp.float32)
        * (-math.log(10000.0) / d_model)
    )                                                                     # (ceil(d/2),)
    angles = position * div_term                                          # (max_len, d/2)
    pe = jnp.zeros((max_len, d_model), dtype=jnp.float32)
    pe = pe.at[:, 0::2].set(jnp.sin(angles))
    pe = pe.at[:, 1::2].set(jnp.cos(angles)[:, : d_model // 2])
    # PyTorch: pe shape (max_len, 1, d_model) -> permute to (1, max_len, d_model)
    return pe[None, :, :].astype(dtype)                                   # (1, max_len, d_model)


def _round_down(x: int, m: int) -> int:
    return (x // m) * m


def _hw_budgets():
    """(target_block_bytes, vmem_limit_bytes) per TPU generation.

    v5e/v6e have 128 MiB VMEM per core -> bigger blocks / limit.
    v7x has 64 MiB -> conservative 6 MiB blocks / 48 MiB limit (also the
    fallback if the hardware query is unavailable).
    """
    vmem_cap = None
    try:
        info = pltpu.get_tpu_info()
        vmem_cap = int(getattr(info, "vmem_capacity_bytes", 0)) or None
    except Exception:
        vmem_cap = None
    if vmem_cap is not None and vmem_cap >= 100 * 1024 * 1024:
        return 8 * 1024 * 1024, 96 * 1024 * 1024     # v5e / v6e (128 MiB VMEM)
    return 6 * 1024 * 1024, 48 * 1024 * 1024         # v7x (64 MiB VMEM) / unknown


def _pe_add_kernel(x_ref, pe_ref, o_ref):
    # Streaming elementwise add (HBM-bandwidth bound).  pe broadcasts over the
    # batch(-tile) axis.  The add happens in the promoted common dtype of
    # x and pe (pe is f32 by default), then is cast to the output dtype.
    o_ref[...] = (x_ref[...] + pe_ref[...]).astype(o_ref.dtype)


def positional_encoding_forward(x, pe):
    """x: (B, L, D); pe: (1, max_len, D), max_len >= L. Returns x + pe[:, :L, :]."""
    B, L, D = x.shape
    max_len = pe.shape[1]
    assert max_len >= L, "sequence length exceeds positional-encoding buffer"
    itemsize = jnp.dtype(x.dtype).itemsize
    target_bytes, vmem_limit = _hw_budgets()

    compiler_params = pltpu.CompilerParams(
        # Outer (seq/chunk) axis parallel -> 2-TC sharding on v7x; inner batch
        # axis arbitrary -> contiguous run per core, pe block stays resident.
        dimension_semantics=("parallel", "arbitrary"),
        vmem_limit_bytes=vmem_limit,
    )

    LD = L * D
    use_2d = (D % 128 != 0) and (LD % 128 == 0)

    if not use_2d:
        # ---- 3-D path: lane axis is the full D (dense when D % 128 == 0,
        # masked tail stores otherwise but VMEM use stays bounded). ----------
        row_bytes = D * itemsize
        rows_fit = max(8, _round_down(target_bytes // row_bytes, 8))
        if rows_fit >= L:
            tile_l = L
            # One batch row is smaller than the target: tile over batch too.
            tile_b = max(1, min(B, target_bytes // max(1, L * row_bytes)))
        else:
            tile_l = rows_fit                          # multiple of 8
            tile_b = 1

        if tile_l % 8 == 0 or tile_l == max_len:
            pe_in = pe                                  # no wrapper-side slice
        else:
            # tile_l == L with L % 8 != 0: the block's seq dim must equal pe's
            # full seq extent too -> tiny (L*D) edge-case slice.
            pe_in = pe[:, :L, :]

        grid = (pl.cdiv(L, tile_l), pl.cdiv(B, tile_b))   # batch innermost
        return pl.pallas_call(
            _pe_add_kernel,
            out_shape=jax.ShapeDtypeStruct((B, L, D), x.dtype),
            grid_spec=pltpu.PrefetchScalarGridSpec(
                num_scalar_prefetch=0,
                grid=grid,
                in_specs=[
                    pl.BlockSpec((tile_b, tile_l, D), lambda l, b: (b, l, 0)),
                    # pe: block index constant across the inner batch axis ->
                    # block stays resident in VMEM (no re-DMA per batch tile).
                    pl.BlockSpec((None, tile_l, D), lambda l, b: (0, l, 0)),
                ],
                out_specs=pl.BlockSpec((tile_b, tile_l, D), lambda l, b: (b, l, 0)),
            ),
            input_output_aliases={0: 0},
            compiler_params=compiler_params,
        )(x, pe_in)

    # ---- 2-D path (D % 128 != 0 but L*D % 128 == 0): fold (L, D) into the
    # lane axis so stores are full-width vst instead of masked vst.msk. -------
    x2 = x.reshape(B, LD)
    # Contiguous reshape of the *full* pe buffer (no slice); flat column j of
    # x2 corresponds exactly to flat column j of pe2 (= row j//D, feature j%D).
    pe2 = pe.reshape(1, max_len * D)

    tile_b = B if B <= 8 else 8
    chunk = min(LD, max(128, _round_down(target_bytes // (tile_b * itemsize), 128)))
    if chunk == LD and B > 8:
        # Spare budget: widen the batch tile (multiple of 8 or full extent).
        fit_b = _round_down(target_bytes // (chunk * itemsize), 8)
        if fit_b >= B:
            tile_b = B
        elif fit_b > tile_b:
            tile_b = fit_b

    grid = (pl.cdiv(LD, chunk), pl.cdiv(B, tile_b))       # batch innermost
    out2 = pl.pallas_call(
        _pe_add_kernel,
        out_shape=jax.ShapeDtypeStruct((B, LD), x.dtype),
        grid_spec=pltpu.PrefetchScalarGridSpec(
            num_scalar_prefetch=0,
            grid=grid,
            in_specs=[
                pl.BlockSpec((tile_b, chunk), lambda j, b: (b, j)),
                # pe chunk resident across the inner batch-tile axis.
                pl.BlockSpec((1, chunk), lambda j, b: (0, j)),
            ],
            out_specs=pl.BlockSpec((tile_b, chunk), lambda j, b: (b, j)),
        ),
        input_output_aliases={0: 0},
        compiler_params=compiler_params,
    )(x2, pe2)
    return out2.reshape(B, L, D)


if __name__ == "__main__":
    key = jax.random.PRNGKey(0)

    # Primary (module-consistent) shapes: batch=2, seq=8, d_model=32, max_len=16.
    # D % 128 != 0 and L*D % 128 == 0 -> exercises the lane-dense folded path.
    B, L, D, MAX_LEN = 2, 8, 32, 16
    x = jax.random.normal(key, (B, L, D), dtype=jnp.float32)
    pe = make_positional_encoding(D, MAX_LEN, dtype=jnp.float32)
    ref = x + pe[:, :L, :]                 # reference computed before the call
    out = jax.block_until_ready(positional_encoding_forward(x, pe))
    assert out.shape == (B, L, D)
    assert jnp.allclose(out, ref, atol=1e-6), "mismatch vs reference (2-D path)"

    # Secondary check: D multiple of 128 -> 3-D lane-dense path with batch tiling.
    B2, L2, D2, ML2 = 2, 8, 128, 16
    x2 = jax.random.normal(jax.random.PRNGKey(1), (B2, L2, D2), dtype=jnp.float32)
    pe2 = make_positional_encoding(D2, ML2, dtype=jnp.float32)
    ref2 = x2 + pe2[:, :L2, :]
    out2 = jax.block_until_ready(positional_encoding_forward(x2, pe2))
    assert jnp.allclose(out2, ref2, atol=1e-6), "mismatch vs reference (3-D path)"

    # Tertiary check: neither D nor L*D a multiple of 128 -> bounded 3-D
    # fallback (full-D lanes, masked tail stores) replacing the old unbounded path.
    B3, L3, D3, ML3 = 3, 7, 20, 16
    x3 = jax.random.normal(jax.random.PRNGKey(2), (B3, L3, D3), dtype=jnp.float32)
    pe3 = make_positional_encoding(D3, ML3, dtype=jnp.float32)
    ref3 = x3 + pe3[:, :L3, :]
    out3 = jax.block_until_ready(positional_encoding_forward(x3, pe3))
    assert jnp.allclose(out3, ref3, atol=1e-6), "mismatch vs reference (fallback path)"

    print("KERNEL_OK")
</pallas_src>

<mosaic_0001>
module attributes {stable_mosaic.version = 11 : i64} {
  func.func @_pe_add_kernel(%arg0: i32, %arg1: i32, %arg2: memref<2x256xf32, #tpu.memory_space<vmem>>, %arg3: memref<1x256xf32, #tpu.memory_space<vmem>>, %arg4: memref<2x256xf32, #tpu.memory_space<vmem>>) attributes {dimension_semantics = [#tpu.dimension_semantics<parallel>, #tpu.dimension_semantics<arbitrary>], iteration_bounds = array<i64: 1, 1>, scalar_prefetch = 0 : i64, scratch_operands = 0 : i64, tpu.core_type = #tpu.core_type<tc>, window_params = [{transform_indices = @transform_0, window_bounds = array<i64: 2, 256>}, {transform_indices = @transform_1, window_bounds = array<i64: 1, 256>}, {transform_indices = @transform_2, window_bounds = array<i64: 2, 256>}]} {
    %c0 = arith.constant 0 : index
    %c0_0 = arith.constant 0 : index
    %0 = vector.load %arg2[%c0, %c0_0] : memref<2x256xf32, #tpu.memory_space<vmem>>, vector<2x256xf32>
    %c0_1 = arith.constant 0 : index
    %c0_2 = arith.constant 0 : index
    %1 = vector.load %arg3[%c0_1, %c0_2] : memref<1x256xf32, #tpu.memory_space<vmem>>, vector<1x256xf32>
    %2 = vector.broadcast %1 : vector<1x256xf32> to vector<2x256xf32>
    %3 = arith.addf %0, %2 : vector<2x256xf32>
    %c0_3 = arith.constant 0 : index
    %c0_4 = arith.constant 0 : index
    %4 = vector.load %arg4[%c0_3, %c0_4] : memref<2x256xf32, #tpu.memory_space<vmem>>, vector<2x256xf32>
    tpu.vector_store %arg4[%c0_3, %c0_4], %3 {strides = array<i32>} : memref<2x256xf32, #tpu.memory_space<vmem>>, vector<2x256xf32>,
    return
  }
  func.func @transform_0(%arg0: i32, %arg1: i32) -> (i32, i32) {
    %c0_i32 = arith.constant 0 : i32
    return %arg1, %arg0 : i32, i32
  }
  func.func @transform_1(%arg0: i32, %arg1: i32) -> (i32, i32) {
    %c0_i32 = arith.constant 0 : i32
    %c0_i32_0 = arith.constant 0 : i32
    return %c0_i32, %arg0 : i32, i32
  }
  func.func @transform_2(%arg0: i32, %arg1: i32) -> (i32, i32) {
    %c0_i32 = arith.constant 0 : i32
    return %arg1, %arg0 : i32, i32
  }
}

</mosaic_0001>

<llo_original>
// kernel: tpu_custom_call.1
$region0: #{tpu_custom_call.1}
  #allocation0 [shape = 'u32[]', space=smem, size = 0x4, offset = 0x4, fixed_abs, tag = 'smem constant byte address 0x4 - core index']
  #allocation1 [shape = 'u32[144,128]{1,0:T(1,128)}', space=vmem, size = 0x12000, scoped, tag = 'internal scratch']
  %s0 = inlined_call_operand.hbm [shape: f32[2,256], index: 0, kind: input, shape index: {}, may-alias: {0,2}]
  %s1 = inlined_call_operand.vmem [shape: f32[1,512], index: 1, kind: input, shape index: {}]
  %s2 = inlined_call_operand.hbm [shape: f32[2,256], index: 2, kind: output, shape index: {}, may-alias: {0,2}]
  %s3 = sld [smem:[#allocation0]]
  $region22: #{tpu_custom_call.1} parent=0
    _
  %s5 = ssub.s32 1, %s3
  %s6 = scalar_select 0, %s5, %s3
  $region1: #{tpu_custom_call.1} parent=0
    #allocation2 [shape = 'u8[2048]{0}', space=vmem, size = 0x800, scoped, tag = 'input window, operand 0, single buffered']
    #allocation3 [shape = 's32[1]{0}', space=sflag, size = 0x4, scoped, tag = 'scoped memory for tpu_custom_call.1']
    #allocation4 [shape = 's32[1]{0}', space=sflag, size = 0x4, scoped, tag = 'scoped memory for tpu_custom_call.1']
    #allocation5 [shape = 'u8[2048]{0}', space=vmem, size = 0x800, scoped, tag = 'output window, operand 0, single buffered']
    %7 = vsyncpa [#allocation3], 0
    %8 = vsyncpa [#allocation4], 0
    // Predicated region
    $region2: #{tpu_custom_call.1} parent=1 // pred_check
      _
    $region3: #{tpu_custom_call.1} parent=1 // pred_check_branch
      %10 = sbr.rel (0) target = $region5
    $region4: #{tpu_custom_call.1} parent=1 // pred_region
      %s12 = ssub.s32 64, 64
      %13 = vsyncadd [#allocation3], %s12
      %s15 = sshll.u32 [#allocation2], 4
      %s16 = int_to_ptr.vmem [resolvable:$true] %s15
      %18 = dma.hbm_to_vmem [thread:$0]  %s0, 64, %s16, [#allocation3]
    $region5: #{tpu_custom_call.1} parent=1 // pred_fallthru
      _
    // Predicated region
    $region6: #{tpu_custom_call.1} parent=1 // pred_check
      _
    $region7: #{tpu_custom_call.1} parent=1 // pred_check_branch
      %20 = sbr.rel (0) target = $region9
    $region8: #{tpu_custom_call.1} parent=1 // pred_region
      _
    $region9: #{tpu_custom_call.1} parent=1 // pred_fallthru
      _
    // Predicated region
    $region10: #{tpu_custom_call.1} parent=1 // pred_check
      _
    $region11: #{tpu_custom_call.1} parent=1 // pred_check_branch
      %22 = sbr.rel (0) target = $region13
    $region12: #{tpu_custom_call.1} parent=1 // pred_region
      %23 = dma.done [#allocation3], 64
    $region13: #{tpu_custom_call.1} parent=1 // pred_fallthru
      _
    %v24 = vld [vmem:[#allocation2] sm:$0xf]
    %v25 = vld [vmem:[%s1] sm:$0x3]
    %v27 = vlaneseq
    %v28 = vshrl.u32 %v27, 7
    %v29 = vsub.s32 0, %v28
    %v30 = vrot.slane %v25, %v29
    %v31 = vlaneseq
    %v32 = vshrl.u32 %v31, 7
    %v33 = vsub.s32 1, %v32
    %v34 = vrot.slane %v25, %v33
    %v35 = vcombine.low %v30, %v34
    %v37 = vunpack.c.l.s4 1983009808
    %v38 = vunpack.c.0.s8 %v37
    %v39 = vlaneseq
    %v40 = vshrl.u32 %v39, 7
    %v41 = vsub.s32 %v38, %v40
    %v42 = vrot.slane %v35, %v41
    %v44 = vadd.f32 %v24, %v42
    %45 = vst [vmem:[#allocation5] sm:$0xf] %v44
    // Predicated region
    $region14: #{tpu_custom_call.1} parent=1 // pred_check
      _
    $region15: #{tpu_custom_call.1} parent=1 // pred_check_branch
      %47 = sbr.rel (0) target = $region17
    $region16: #{tpu_custom_call.1} parent=1 // pred_region
      %s49 = ssub.s32 64, 64
      %50 = vsyncadd [#allocation4], %s49
      %s52 = sshll.u32 [#allocation5], 4
      %s53 = int_to_ptr.vmem [resolvable:$true] %s52
      %55 = dma.vmem_to_hbm [thread:$0]  %s53, 64, %s2, [#allocation4]
    $region17: #{tpu_custom_call.1} parent=1 // pred_fallthru
      _
    // Predicated region
    $region18: #{tpu_custom_call.1} parent=1 // pred_check
      _
    $region19: #{tpu_custom_call.1} parent=1 // pred_check_branch
      %57 = sbr.rel (0) target = $region21
    $region20: #{tpu_custom_call.1} parent=1 // pred_region
      %58 = dma.done [#allocation4], 64
    $region21: #{tpu_custom_call.1} parent=1 // pred_fallthru
      _
    %59 = vsyncpa [#allocation3], 1
    %60 = vsyncpa [#allocation4], 1

</llo_original>
